<compile_context>
chip_gen: v7x
topology: tpu7x:2x2x1
jax: 0.10.0
libtpu: 0.0.40
codegen_flags: <defaults>
</compile_context>

<pallas_src>
import functools
import math

import jax
import jax.numpy as jnp
from jax.experimental import pallas as pl
from jax.experimental.pallas import tpu as pltpu


# ---------------------------------------------------------------------------
# Generation-aware VMEM budget
# ---------------------------------------------------------------------------

_VMEM_LIMIT = None


def _vmem_limit_bytes():
    """~75% of physical VMEM (96 MiB on v5e/v6e, 48 MiB on v7x); 48 MiB fallback."""
    global _VMEM_LIMIT
    if _VMEM_LIMIT is None:
        try:
            cap = int(pltpu.get_tpu_info().vmem_capacity_bytes)
        except Exception:
            cap = 64 * 1024 * 1024
        _VMEM_LIMIT = min(int(cap * 0.75), 100 * 1024 * 1024)
    return _VMEM_LIMIT


def _gemm_max_rows():
    # v5e/v6e (128 MiB VMEM) afford 1024-row GEMM tiles; keep 512 on v7x (64 MiB VMEM).
    return 1024 if _vmem_limit_bytes() >= (80 << 20) else 512


# ---------------------------------------------------------------------------
# Single-buffering of grid-invariant blocks (probed once, falls back silently)
# ---------------------------------------------------------------------------

_SINGLE_BUFFER_OK = None


def _single_buffer_supported():
    """Probe whether pipeline_mode=pl.Buffered(buffer_count=1) lowers & runs on this JAX/TPU."""
    global _SINGLE_BUFFER_OK
    if _SINGLE_BUFFER_OK is None:
        try:
            def _probe_kernel(x_ref, w_ref, o_ref):
                o_ref[...] = x_ref[...] + w_ref[...]

            probe = pl.pallas_call(
                _probe_kernel,
                out_shape=jax.ShapeDtypeStruct((16, 128), jnp.float32),
                grid=(2,),
                in_specs=[
                    pl.BlockSpec((8, 128), lambda i: (i, 0)),
                    pl.BlockSpec((8, 128), lambda i: (0, 0),
                                 pipeline_mode=pl.Buffered(buffer_count=1)),
                ],
                out_specs=pl.BlockSpec((8, 128), lambda i: (i, 0)),
            )
            jax.block_until_ready(
                probe(jnp.zeros((16, 128), jnp.float32), jnp.zeros((8, 128), jnp.float32)))
            _SINGLE_BUFFER_OK = True
        except Exception:
            _SINGLE_BUFFER_OK = False
    return _SINGLE_BUFFER_OK


def _const_spec(block_shape, index_map):
    """BlockSpec for a grid-invariant block; single-buffered (halves its VMEM) when supported."""
    if _single_buffer_supported():
        return pl.BlockSpec(block_shape, index_map,
                            pipeline_mode=pl.Buffered(buffer_count=1))
    return pl.BlockSpec(block_shape, index_map)


# ---------------------------------------------------------------------------
# Tile-size helpers
# ---------------------------------------------------------------------------

def _choose_row_tile(M, max_rows=512):
    """Largest row tile dividing M, multiple of 8, <= max_rows; prefers >=2 blocks (megacore)."""
    if M <= max_rows:
        half = M // 2
        if M % 2 == 0 and half % 8 == 0:
            return half
        return M
    bm = (max_rows // 8) * 8
    while bm >= 8:
        if M % bm == 0:
            return bm
        bm -= 8
    return M  # M not a multiple of 8: single (unpipelined) block — correct fallback.


def _choose_col_tile(N, max_cols=512):
    """Largest MXU-friendly (multiple of 128) tile dividing N, else full N."""
    if N <= max_cols:
        return N
    bn = (max_cols // 128) * 128
    while bn >= 128:
        if N % bn == 0:
            return bn
        bn -= 128
    return N


# ---------------------------------------------------------------------------
# Kernels
# ---------------------------------------------------------------------------

def _qkv_proj_kernel(x_ref, w_ref, b_ref, q_ref, k_ref, v_ref, *, d_model, q_scale):
    # One fused (bm, D) @ (D, 3D) bf16 matmul (f32 accumulation); split into lane-dense
    # q/k/v slabs, stored as bf16 (they are pure matmul inputs downstream).
    x = x_ref[...].astype(jnp.bfloat16)
    h = jnp.dot(x, w_ref[...], preferred_element_type=jnp.float32) + b_ref[...]
    q_ref[...] = (h[:, :d_model] * q_scale).astype(q_ref.dtype)     # fold 1/sqrt(dh) here
    k_ref[...] = h[:, d_model:2 * d_model].astype(k_ref.dtype)
    v_ref[...] = h[:, 2 * d_model:].astype(v_ref.dtype)


def _flash_attn_kernel(q_ref, k_ref, v_ref, o_ref, m_ref, l_ref, acc_ref, *, nhead, head_dim):
    """Online-softmax attention; all heads of one (batch, q-tile) per grid step.

    Heads use a static loop over lane slices with per-head scratch state.
    # TODO(synk): head-major (B,H,S,dh) layout + one batched dot_general per KV step.
    """
    ki = pl.program_id(2)

    @pl.when(ki == 0)
    def _():
        m_ref[...] = jnp.full(m_ref.shape, -jnp.inf, dtype=jnp.float32)
        l_ref[...] = jnp.zeros(l_ref.shape, dtype=jnp.float32)
        acc_ref[...] = jnp.zeros(acc_ref.shape, dtype=jnp.float32)

    for h in range(nhead):                       # static unroll over heads
        sl = slice(h * head_dim, (h + 1) * head_dim)
        qh = q_ref[0, :, sl]                     # (tq, dh) bf16, already scaled by 1/sqrt(dh)
        kh = k_ref[0, :, sl]                     # (tk, dh) bf16
        vh = v_ref[0, :, sl]                     # (tk, dh) bf16

        s = jax.lax.dot_general(qh, kh, (((1,), (1,)), ((), ())),
                                preferred_element_type=jnp.float32)   # (tq, tk) f32

        m_prev = m_ref[h]                                             # (tq, 1)
        m_new = jnp.maximum(m_prev, jnp.max(s, axis=-1, keepdims=True))
        alpha = jnp.exp(m_prev - m_new)
        p = jnp.exp(s - m_new)                   # f32 softmax math (v5e-safe)
        l_ref[h] = alpha * l_ref[h] + jnp.sum(p, axis=-1, keepdims=True)
        acc_ref[h] = alpha * acc_ref[h] + jnp.dot(
            p.astype(jnp.bfloat16), vh, preferred_element_type=jnp.float32)
        m_ref[h] = m_new

    @pl.when(ki == pl.num_programs(2) - 1)
    def _():
        # Single lane-dense (tq, D) store instead of per-head masked stores.
        # Exact divide for the final normalization (once per output element, negligible cost).
        heads = [acc_ref[h] / l_ref[h] for h in range(nhead)]
        o_ref[0] = jnp.concatenate(heads, axis=-1).astype(o_ref.dtype)


def _out_proj_add_ln_kernel(attn_ref, res_ref, w_ref, b_ref, g_ref, beta_ref, o_ref):
    # out_proj (bf16 matmul, f32 acc) + residual add + LayerNorm (eps=1e-5, affine), fused.
    a = attn_ref[...]                                     # already bf16
    y = jnp.dot(a, w_ref[...], preferred_element_type=jnp.float32) + b_ref[...]
    z = res_ref[...] + y
    mu = jnp.mean(z, axis=-1, keepdims=True)
    zc = z - mu
    var = jnp.mean(zc * zc, axis=-1, keepdims=True)
    inv = jax.lax.rsqrt(var + 1e-5)
    o_ref[...] = (zc * inv * g_ref[...] + beta_ref[...]).astype(o_ref.dtype)


def _ffn_add_ln_kernel(x_ref, w1_ref, b1_ref, w2_ref, b2_ref, g_ref, beta_ref, o_ref):
    # y = relu(x@W1+b1)@W2 + b2, F tiled on grid axis 1; z = x + y; LayerNorm(z).
    # Accumulates directly into the VMEM-resident f32 output block (no scratch).
    f = pl.program_id(1)

    @pl.when(f == 0)
    def _():
        o_ref[...] = x_ref[...] + b2_ref[...]             # residual + final bias

    x = x_ref[...].astype(jnp.bfloat16)
    h = jnp.dot(x, w1_ref[...], preferred_element_type=jnp.float32) + b1_ref[...]
    h = jnp.maximum(h, 0.0).astype(jnp.bfloat16)
    o_ref[...] += jnp.dot(h, w2_ref[...], preferred_element_type=jnp.float32)

    @pl.when(f == pl.num_programs(1) - 1)
    def _():
        z = o_ref[...]
        mu = jnp.mean(z, axis=-1, keepdims=True)
        zc = z - mu
        var = jnp.mean(zc * zc, axis=-1, keepdims=True)
        inv = jax.lax.rsqrt(var + 1e-5)
        o_ref[...] = (zc * inv * g_ref[...] + beta_ref[...]).astype(o_ref.dtype)


# ---------------------------------------------------------------------------
# Wrappers (pallas_call plumbing)
# ---------------------------------------------------------------------------

def qkv_projection(x, w, b, *, d_model, q_scale):
    M, D = x.shape
    N = w.shape[1]                                   # 3*D
    bm = _choose_row_tile(M, max_rows=_gemm_max_rows())
    out_sd = jax.ShapeDtypeStruct((M, d_model), jnp.bfloat16)   # bf16 intermediates
    row_out = pl.BlockSpec((bm, d_model), lambda i: (i, 0))
    kernel = functools.partial(_qkv_proj_kernel, d_model=d_model, q_scale=q_scale)
    # TODO(synk): for very large d_model (>=4096) column-tile the (D,3D) weight for v7x VMEM.
    return pl.pallas_call(
        kernel,
        out_shape=(out_sd, out_sd, out_sd),
        grid=(M // bm,),
        in_specs=[
            pl.BlockSpec((bm, D), lambda i: (i, 0)),
            _const_spec((D, N), lambda i: (0, 0)),    # grid-invariant weight (single-buffered)
            _const_spec((1, N), lambda i: (0, 0)),
        ],
        out_specs=(row_out, row_out, row_out),
        compiler_params=pltpu.CompilerParams(
            dimension_semantics=("parallel",), vmem_limit_bytes=_vmem_limit_bytes()),
    )(x, w.astype(jnp.bfloat16), b.reshape(1, N))


def flash_attention(q, k, v, *, nhead):
    B, S, D = q.shape
    dh = D // nhead
    # Larger q/kv tiles -> fewer grid steps and less K/V re-streaming (fits VMEM on v7x too:
    # bf16 q/k/v/o tiles + f32 m/l/acc scratch stay well under the 48 MiB limit at tq=tk=512).
    tq = _choose_row_tile(S, max_rows=512)
    tk = tq
    q_spec = pl.BlockSpec((1, tq, D), lambda b, qi, ki: (b, qi, 0))
    kv_spec = pl.BlockSpec((1, tk, D), lambda b, qi, ki: (b, ki, 0))
    o_spec = pl.BlockSpec((1, tq, D), lambda b, qi, ki: (b, qi, 0))
    kernel = functools.partial(_flash_attn_kernel, nhead=nhead, head_dim=dh)
    return pl.pallas_call(
        kernel,
        out_shape=jax.ShapeDtypeStruct((B, S, D), jnp.bfloat16),    # bf16 intermediate
        grid=(B, S // tq, S // tk),
        in_specs=[q_spec, kv_spec, kv_spec],
        out_specs=o_spec,
        scratch_shapes=[
            pltpu.VMEM((nhead, tq, 1), jnp.float32),    # running max m
            pltpu.VMEM((nhead, tq, 1), jnp.float32),    # running sum l
            pltpu.VMEM((nhead, tq, dh), jnp.float32),   # running output acc
        ],
        compiler_params=pltpu.CompilerParams(
            dimension_semantics=("parallel", "parallel", "arbitrary"),
            vmem_limit_bytes=_vmem_limit_bytes()),
    )(q, k, v)


def out_proj_add_layernorm(attn, resid, w, b, gamma, beta):
    M, D = attn.shape
    bm = _choose_row_tile(M, max_rows=_gemm_max_rows())
    row = pl.BlockSpec((bm, D), lambda i: (i, 0))
    return pl.pallas_call(
        _out_proj_add_ln_kernel,
        out_shape=jax.ShapeDtypeStruct((M, D), jnp.float32),
        grid=(M // bm,),
        in_specs=[
            row, row,
            _const_spec((D, D), lambda i: (0, 0)),
            _const_spec((1, D), lambda i: (0, 0)),
            _const_spec((1, D), lambda i: (0, 0)),
            _const_spec((1, D), lambda i: (0, 0)),
        ],
        out_specs=row,
        compiler_params=pltpu.CompilerParams(
            dimension_semantics=("parallel",), vmem_limit_bytes=_vmem_limit_bytes()),
    )(attn, resid, w.astype(jnp.bfloat16),
      b.reshape(1, D), gamma.reshape(1, D), beta.reshape(1, D))


def ffn_add_layernorm(x, w1, b1, w2, b2, gamma, beta):
    M, D = x.shape
    F = w1.shape[1]
    bm = _choose_row_tile(M, max_rows=_gemm_max_rows())
    bf = _choose_col_tile(F)
    row = pl.BlockSpec((bm, D), lambda i, f: (i, 0))
    return pl.pallas_call(
        _ffn_add_ln_kernel,
        out_shape=jax.ShapeDtypeStruct((M, D), jnp.float32),
        grid=(M // bm, F // bf),
        in_specs=[
            row,
            pl.BlockSpec((D, bf), lambda i, f: (0, f)),
            pl.BlockSpec((1, bf), lambda i, f: (0, f)),
            pl.BlockSpec((bf, D), lambda i, f: (f, 0)),
            _const_spec((1, D), lambda i, f: (0, 0)),
            _const_spec((1, D), lambda i, f: (0, 0)),
            _const_spec((1, D), lambda i, f: (0, 0)),
        ],
        out_specs=row,
        compiler_params=pltpu.CompilerParams(
            dimension_semantics=("parallel", "arbitrary"),
            vmem_limit_bytes=_vmem_limit_bytes()),
    )(x, w1.astype(jnp.bfloat16), b1.reshape(1, F), w2.astype(jnp.bfloat16),
      b2.reshape(1, D), gamma.reshape(1, D), beta.reshape(1, D))


# ---------------------------------------------------------------------------
# Full forward
# ---------------------------------------------------------------------------

def transformer_encoder_layer(src, params):
    S, B, D = src.shape
    H = params["nhead"]
    assert D % H == 0
    dh = D // H

    # (S, B, D) -> (B, S, D) -> (B*S, D): with row = b*S + s, the token matrix reshapes to
    # (B, S, D) for attention with zero data movement; every kernel then works on lane-dense
    # (., D) slabs.
    # TODO(synk): fold these two transposes into the first/last pallas_call index_maps.
    x = src.astype(jnp.float32).transpose(1, 0, 2).reshape(B * S, D)

    # --- Multi-head self-attention (dropout inside MHA = identity in eval mode) ----------
    q, k, v = qkv_projection(x, params["in_proj_w"], params["in_proj_b"],
                             d_model=D, q_scale=1.0 / math.sqrt(dh))
    attn = flash_attention(q.reshape(B, S, D), k.reshape(B, S, D), v.reshape(B, S, D),
                           nhead=H)                                   # (B, S, D) bf16

    # out_proj + residual (dropout1 = identity) + LayerNorm1, fused
    x1 = out_proj_add_layernorm(attn.reshape(B * S, D), x,
                                params["out_proj_w"], params["out_proj_b"],
                                params["ln1_g"], params["ln1_b"])

    # FFN (dropout = identity) + residual (dropout2 = identity) + LayerNorm2, fused
    out = ffn_add_layernorm(x1, params["w1"], params["b1"], params["w2"], params["b2"],
                            params["ln2_g"], params["ln2_b"])

    return out.reshape(B, S, D).transpose(1, 0, 2)


# ---------------------------------------------------------------------------
# Pure-JAX f32 reference for correctness check
# ---------------------------------------------------------------------------

def reference(src, params):
    S, B, D = src.shape
    H = params["nhead"]
    dh = D // H
    x = src.reshape(S * B, D)

    qkv = x @ params["in_proj_w"] + params["in_proj_b"]
    qkv = qkv.reshape(S, B, 3, H, dh)
    q = qkv[:, :, 0].transpose(1, 2, 0, 3).reshape(B * H, S, dh) / math.sqrt(dh)
    k = qkv[:, :, 1].transpose(1, 2, 0, 3).reshape(B * H, S, dh)
    v = qkv[:, :, 2].transpose(1, 2, 0, 3).reshape(B * H, S, dh)
    s = jnp.einsum("bqd,bkd->bqk", q, k)
    p = jax.nn.softmax(s, axis=-1)
    a = jnp.einsum("bqk,bkd->bqd", p, v)
    a = a.reshape(B, H, S, dh).transpose(2, 0, 1, 3).reshape(S * B, D)
    a = a @ params["out_proj_w"] + params["out_proj_b"]

    def ln(z, g, b):
        mu = jnp.mean(z, axis=-1, keepdims=True)
        var = jnp.mean((z - mu) ** 2, axis=-1, keepdims=True)
        return (z - mu) / jnp.sqrt(var + 1e-5) * g + b

    x = ln(x + a, params["ln1_g"], params["ln1_b"])
    h = jnp.maximum(x @ params["w1"] + params["b1"], 0.0)
    f = h @ params["w2"] + params["b2"]
    x = ln(x + f, params["ln2_g"], params["ln2_b"])
    return x.reshape(S, B, D)


# ---------------------------------------------------------------------------

if __name__ == "__main__":
    # Small shapes consistent with the module: seq=8, batch=2, d_model=32, nhead=4, ffn=64.
    S, B, D, H, F = 8, 2, 32, 4, 64

    key = jax.random.PRNGKey(0)
    keys = jax.random.split(key, 8)

    def winit(k, shape):
        return jax.random.normal(k, shape, dtype=jnp.float32) * 0.02

    params = {
        "nhead": H,
        # weights stored (in, out)  (= PyTorch weight.T)
        "in_proj_w": winit(keys[0], (D, 3 * D)),
        "in_proj_b": jnp.zeros((3 * D,), jnp.float32),
        "out_proj_w": winit(keys[1], (D, D)),
        "out_proj_b": jnp.zeros((D,), jnp.float32),
        "w1": winit(keys[2], (D, F)),
        "b1": winit(keys[3], (F,)),
        "w2": winit(keys[4], (F, D)),
        "b2": winit(keys[5], (D,)),
        # LayerNorm default init: gamma=1, beta=0
        "ln1_g": jnp.ones((D,), jnp.float32),
        "ln1_b": jnp.zeros((D,), jnp.float32),
        "ln2_g": jnp.ones((D,), jnp.float32),
        "ln2_b": jnp.zeros((D,), jnp.float32),
    }

    src = jax.random.normal(keys[6], (S, B, D), dtype=jnp.float32)

    out = transformer_encoder_layer(src, params)
    out = jax.block_until_ready(out)

    ref = reference(src, params)
    assert out.shape == (S, B, D)
    # bf16 matmul operands and bf16 q/k/v/attn intermediates (f32 accumulation) -> loosened tolerance.
    assert jnp.allclose(out, ref, atol=2.5e-2, rtol=2.5e-2), "Pallas output mismatch vs JAX reference"

    print("KERNEL_OK")
</pallas_src>

<mosaic_0001>
module attributes {stable_mosaic.version = 11 : i64} {
  func.func @_probe_kernel(%arg0: i32, %arg1: memref<8x128xf32, #tpu.memory_space<vmem>>, %arg2: memref<8x128xf32, #tpu.memory_space<vmem>>, %arg3: memref<8x128xf32, #tpu.memory_space<vmem>>) attributes {dimension_semantics = [#tpu.dimension_semantics<arbitrary>], iteration_bounds = array<i64: 2>, scalar_prefetch = 0 : i64, scratch_operands = 0 : i64, tpu.core_type = #tpu.core_type<tc>, window_params = [{transform_indices = @transform_0, window_bounds = array<i64: 8, 128>}, {pipeline_mode = #tpu.pipeline_mode<synchronous>, transform_indices = @transform_1, window_bounds = array<i64: 8, 128>}, {transform_indices = @transform_2, window_bounds = array<i64: 8, 128>}]} {
    %c0 = arith.constant 0 : index
    %c0_0 = arith.constant 0 : index
    %0 = vector.load %arg1[%c0, %c0_0] : memref<8x128xf32, #tpu.memory_space<vmem>>, vector<8x128xf32>
    %c0_1 = arith.constant 0 : index
    %c0_2 = arith.constant 0 : index
    %1 = vector.load %arg2[%c0_1, %c0_2] : memref<8x128xf32, #tpu.memory_space<vmem>>, vector<8x128xf32>
    %2 = arith.addf %0, %1 : vector<8x128xf32>
    %c0_3 = arith.constant 0 : index
    %c0_4 = arith.constant 0 : index
    %3 = vector.load %arg3[%c0_3, %c0_4] : memref<8x128xf32, #tpu.memory_space<vmem>>, vector<8x128xf32>
    tpu.vector_store %arg3[%c0_3, %c0_4], %2 {strides = array<i32>} : memref<8x128xf32, #tpu.memory_space<vmem>>, vector<8x128xf32>,
    return
  }
  func.func @transform_0(%arg0: i32) -> (i32, i32) {
    %c0_i32 = arith.constant 0 : i32
    %c0_i32_0 = arith.constant 0 : i32
    return %arg0, %c0_i32 : i32, i32
  }
  func.func @transform_1(%arg0: i32) -> (i32, i32) {
    %c0_i32 = arith.constant 0 : i32
    %c0_i32_0 = arith.constant 0 : i32
    %c0_i32_1 = arith.constant 0 : i32
    return %c0_i32, %c0_i32_0 : i32, i32
  }
  func.func @transform_2(%arg0: i32) -> (i32, i32) {
    %c0_i32 = arith.constant 0 : i32
    %c0_i32_0 = arith.constant 0 : i32
    return %arg0, %c0_i32 : i32, i32
  }
}

module attributes {stable_mosaic.version = 11 : i64} {
  func.func @_qkv_proj_kernel(%arg0: i32, %arg1: memref<8x32xf32, #tpu.memory_space<vmem>>, %arg2: memref<32x96xbf16, #tpu.memory_space<vmem>>, %arg3: memref<1x96xf32, #tpu.memory_space<vmem>>, %arg4: memref<8x32xbf16, #tpu.memory_space<vmem>>, %arg5: memref<8x32xbf16, #tpu.memory_space<vmem>>, %arg6: memref<8x32xbf16, #tpu.memory_space<vmem>>) attributes {dimension_semantics = [#tpu.dimension_semantics<parallel>], iteration_bounds = array<i64: 2>, scalar_prefetch = 0 : i64, scratch_operands = 0 : i64, tpu.core_type = #tpu.core_type<tc>, window_params = [{transform_indices = @transform_0, window_bounds = array<i64: 8, 32>}, {pipeline_mode = #tpu.pipeline_mode<synchronous>, transform_indices = @transform_1, window_bounds = array<i64: 32, 96>}, {pipeline_mode = #tpu.pipeline_mode<synchronous>, transform_indices = @transform_2, window_bounds = array<i64: 1, 96>}, {transform_indices = @transform_3, window_bounds = array<i64: 8, 32>}, {transform_indices = @transform_4, window_bounds = array<i64: 8, 32>}, {transform_indices = @transform_5, window_bounds = array<i64: 8, 32>}]} {
    %c0 = arith.constant 0 : index
    %c0_0 = arith.constant 0 : index
    %0 = vector.load %arg1[%c0, %c0_0] : memref<8x32xf32, #tpu.memory_space<vmem>>, vector<8x32xf32>
    %1 = arith.truncf %0 : vector<8x32xf32> to vector<8x32xbf16>
    %c0_1 = arith.constant 0 : index
    %c0_2 = arith.constant 0 : index
    %2 = vector.load %arg2[%c0_1, %c0_2] : memref<32x96xbf16, #tpu.memory_space<vmem>>, vector<32x96xbf16>
    %cst = arith.constant dense<0.000000e+00> : vector<8x96xf32>
    %3 = tpu.matmul %1, %2, %cst {dimension_numbers = #tpu.dot_dimension_numbers<[1], [0], [0], [1], [0, 0, 1, 1], [], []>} : vector<8x32xbf16>, vector<32x96xbf16>, vector<8x96xf32> -> vector<8x96xf32>
    %c0_3 = arith.constant 0 : index
    %c0_4 = arith.constant 0 : index
    %4 = vector.load %arg3[%c0_3, %c0_4] : memref<1x96xf32, #tpu.memory_space<vmem>>, vector<1x96xf32>
    %5 = vector.broadcast %4 : vector<1x96xf32> to vector<8x96xf32>
    %6 = arith.addf %3, %5 : vector<8x96xf32>
    %7 = vector.extract_strided_slice %6 {offsets = [0, 0], sizes = [8, 32], strides = [1, 1]} : vector<8x96xf32> to vector<8x32xf32>
    %cst_5 = arith.constant 0.353553385 : f32
    %8 = vector.broadcast %cst_5 : f32 to vector<8x32xf32>
    %9 = arith.mulf %7, %8 : vector<8x32xf32>
    %10 = arith.truncf %9 : vector<8x32xf32> to vector<8x32xbf16>
    %c0_6 = arith.constant 0 : index
    %c0_7 = arith.constant 0 : index
    %11 = vector.load %arg4[%c0_6, %c0_7] : memref<8x32xbf16, #tpu.memory_space<vmem>>, vector<8x32xbf16>
    tpu.vector_store %arg4[%c0_6, %c0_7], %10 {strides = array<i32>} : memref<8x32xbf16, #tpu.memory_space<vmem>>, vector<8x32xbf16>,
    %12 = vector.extract_strided_slice %6 {offsets = [0, 32], sizes = [8, 32], strides = [1, 1]} : vector<8x96xf32> to vector<8x32xf32>
    %13 = arith.truncf %12 : vector<8x32xf32> to vector<8x32xbf16>
    %c0_8 = arith.constant 0 : index
    %c0_9 = arith.constant 0 : index
    %14 = vector.load %arg5[%c0_8, %c0_9] : memref<8x32xbf16, #tpu.memory_space<vmem>>, vector<8x32xbf16>
    tpu.vector_store %arg5[%c0_8, %c0_9], %13 {strides = array<i32>} : memref<8x32xbf16, #tpu.memory_space<vmem>>, vector<8x32xbf16>,
    %15 = vector.extract_strided_slice %6 {offsets = [0, 64], sizes = [8, 32], strides = [1, 1]} : vector<8x96xf32> to vector<8x32xf32>
    %16 = arith.truncf %15 : vector<8x32xf32> to vector<8x32xbf16>
    %c0_10 = arith.constant 0 : index
    %c0_11 = arith.constant 0 : index
    %17 = vector.load %arg6[%c0_10, %c0_11] : memref<8x32xbf16, #tpu.memory_space<vmem>>, vector<8x32xbf16>
    tpu.vector_store %arg6[%c0_10, %c0_11], %16 {strides = array<i32>} : memref<8x32xbf16, #tpu.memory_space<vmem>>, vector<8x32xbf16>,
    return
  }
  func.func @transform_0(%arg0: i32) -> (i32, i32) {
    %c0_i32 = arith.constant 0 : i32
    %c0_i32_0 = arith.constant 0 : i32
    return %arg0, %c0_i32 : i32, i32
  }
  func.func @transform_1(%arg0: i32) -> (i32, i32) {
    %c0_i32 = arith.constant 0 : i32
    %c0_i32_0 = arith.constant 0 : i32
    %c0_i32_1 = arith.constant 0 : i32
    return %c0_i32, %c0_i32_0 : i32, i32
  }
  func.func @transform_2(%arg0: i32) -> (i32, i32) {
    %c0_i32 = arith.constant 0 : i32
    %c0_i32_0 = arith.constant 0 : i32
    %c0_i32_1 = arith.constant 0 : i32
    return %c0_i32, %c0_i32_0 : i32, i32
  }
  func.func @transform_3(%arg0: i32) -> (i32, i32) {
    %c0_i32 = arith.constant 0 : i32
    %c0_i32_0 = arith.constant 0 : i32
    return %arg0, %c0_i32 : i32, i32
  }
  func.func @transform_4(%arg0: i32) -> (i32, i32) {
    %c0_i32 = arith.constant 0 : i32
    %c0_i32_0 = arith.constant 0 : i32
    return %arg0, %c0_i32 : i32, i32
  }
  func.func @transform_5(%arg0: i32) -> (i32, i32) {
    %c0_i32 = arith.constant 0 : i32
    %c0_i32_0 = arith.constant 0 : i32
    return %arg0, %c0_i32 : i32, i32
  }
}

</mosaic_0001>

<llo_original>
// kernel: tpu_custom_call.1
$region0: #{tpu_custom_call.1}
  #allocation0 [shape = 'u32[]', space=smem, size = 0x4, offset = 0x4, fixed_abs, tag = 'smem constant byte address 0x4 - core index']
  #allocation1 [shape = 'u32[144,128]{1,0:T(1,128)}', space=vmem, size = 0x12000, scoped, tag = 'internal scratch']
  %s0 = inlined_call_operand.hbm [shape: f32[16,128], index: 0, kind: input, shape index: {}]
  %s1 = inlined_call_operand.hbm [shape: f32[8,128], index: 1, kind: input, shape index: {}]
  %s2 = inlined_call_operand.hbm [shape: f32[16,128], index: 2, kind: output, shape index: {}]
  %s3 = sld [smem:[#allocation0]]
  $region49: #{tpu_custom_call.1} parent=0
    _
  %s5 = ssub.s32 1, %s3
  %s6 = scalar_select 0, %s5, %s3
  $region1: #{tpu_custom_call.1} parent=0
    #allocation2 [shape = 'u8[8192]{0}', space=vmem, size = 0x2000, scoped, tag = 'input window, operand 0']
    #allocation3 [shape = 's32[2]{0}', space=sflag, size = 0x8, scoped, tag = 'scoped memory for tpu_custom_call.1']
    #allocation4 [shape = 's32[2]{0}', space=sflag, size = 0x8, scoped, tag = 'scoped memory for tpu_custom_call.1']
    #allocation5 [shape = 'u8[4096]{0}', space=vmem, size = 0x1000, scoped, tag = 'input window, operand 1, single buffered']
    #allocation6 [shape = 's32[1]{0}', space=sflag, size = 0x4, scoped, tag = 'scoped memory for tpu_custom_call.1']
    #allocation7 [shape = 'u8[8192]{0}', space=vmem, size = 0x2000, scoped, tag = 'output window, operand 0']
    %7 = vsyncpa [#allocation3], 0
    %s8 = scalar_lea.sflag [#allocation3], 1
    %9 = vsyncpa %s8, 0
    %10 = vsyncpa [#allocation6], 0
    %11 = vsyncpa [#allocation4], 0
    %s12 = scalar_lea.sflag [#allocation4], 1
    %13 = vsyncpa %s12, 0
    loop: start=0, step=1, limit=4
    $region2: #{tpu_custom_call.1} parent=1 // loop_pre_header
      _
    $region3: #{tpu_custom_call.1} parent=1 // loop_header
      %s15 = sphi 0, %s19
      %p16 = scmp.ge.s32.totalorder %s15, 4
      %s25 = sphi 0, %s27
      %s28 = sphi 0, %s25
      %s29 = sphi 0, %s28
      %s45 = sphi 0, %s29
      %s49 = sphi 0, %s49
      %s51 = sphi 0, %s49
      %s52 = sphi 0, %s51
      %s66 = sphi 0, %s52
      %s72 = sphi 0, %s74
      %s75 = sphi 0, %s72
      %s76 = sphi 0, %s75
      %s92 = sphi 0, %s76
    $region4: #{tpu_custom_call.1} parent=1 // loop_header_branch
      %18 = sbr.rel (%p16) target = $region8
    $region5: #{tpu_custom_call.1} parent=1 // loop_body
      %s20 = ssub.s32 %s15, 1
      %s21 = ssub.s32 %s15, 2
      %s22 = sadd.s32 %s15, 1
      %s23 = ssub.s32 %s15, %s22
      %p24 = scmp.eq.s32.totalorder %s23, 0
      %s26 = sadd.s32 %s25, 1
      %s27 = scalar_select %p24, %s25, %s26
      %p30 = pneg %p24
      %p31 = scmp.eq.s32.totalorder %s15, 1
      %p32 = por %p30, %p31
      %p33 = scmp.ne.s32.totalorder %s25, %s28
      %p34 = scmp.eq.s32.totalorder %s15, 0
      %p35 = por %p33, %p34
      %p36 = scmp.ne.s32.totalorder %s25, %s28
      %p37 = scmp.eq.s32.totalorder %s20, 1
      %p38 = por %p36, %p37
      %p39 = scmp.ne.s32.totalorder %s28, %s29
      %p40 = scmp.eq.s32.totalorder %s20, 0
      %p41 = por %p39, %p40
      %p42 = scmp.ne.s32.totalorder %s28, %s29
      %p43 = scmp.eq.s32.totalorder %s21, 1
      %p44 = por %p42, %p43
      %p46 = scmp.ne.s32.totalorder %s29, %s45
      %p47 = scmp.eq.s32.totalorder %s21, 0
      %p48 = por %p46, %p47
      %s50 = sadd.s32 %s49, 1
      %p53 = scmp.eq.s32.totalorder %s15, 1
      %p54 = scmp.ne.s32.totalorder %s49, %s51
      %p55 = scmp.eq.s32.totalorder %s15, 0
      %p56 = por %p54, %p55
      %p57 = scmp.ne.s32.totalorder %s49, %s51
      %p58 = scmp.eq.s32.totalorder %s20, 1
      %p59 = por %p57, %p58
      %p60 = scmp.ne.s32.totalorder %s51, %s52
      %p61 = scmp.eq.s32.totalorder %s20, 0
      %p62 = por %p60, %p61
      %p63 = scmp.ne.s32.totalorder %s51, %s52
      %p64 = scmp.eq.s32.totalorder %s21, 1
      %p65 = por %p63, %p64
      %p67 = scmp.ne.s32.totalorder %s52, %s66
      %p68 = scmp.eq.s32.totalorder %s21, 0
      %p69 = por %p67, %p68
      %s70 = ssub.s32 %s15, %s22
      %p71 = scmp.eq.s32.totalorder %s70, 0
      %s73 = sadd.s32 %s72, 1
      %s74 = scalar_select %p71, %s72, %s73
      %p77 = pneg %p71
      %p78 = scmp.eq.s32.totalorder %s15, 1
      %p79 = por %p77, %p78
      %p80 = scmp.ne.s32.totalorder %s72, %s75
      %p81 = scmp.eq.s32.totalorder %s15, 0
      %p82 = por %p80, %p81
      %p83 = scmp.ne.s32.totalorder %s72, %s75
      %p84 = scmp.eq.s32.totalorder %s20, 1
      %p85 = por %p83, %p84
      %p86 = scmp.ne.s32.totalorder %s75, %s76
      %p87 = scmp.eq.s32.totalorder %s20, 0
      %p88 = por %p86, %p87
      %p89 = scmp.ne.s32.totalorder %s75, %s76
      %p90 = scmp.eq.s32.totalorder %s21, 1
      %p91 = por %p89, %p90
      %p93 = scmp.ne.s32.totalorder %s76, %s92
      %p94 = scmp.eq.s32.totalorder %s21, 0
      %p95 = por %p93, %p94
      %p96 = scmp.le.s32.totalorder 1, %s15
      %p97 = scmp.lt.s32.totalorder %s15, 3
      %p98 = pnand %p96, %p97
      %p99 = pneg %p98
      // Predicated region
      $region9: #{tpu_custom_call.1} parent=5 // pred_check
        _
      $region10: #{tpu_custom_call.1} parent=5 // pred_check_branch
        %101 = sbr.rel (%p98) target = $region12
      $region11: #{tpu_custom_call.1} parent=5 // pred_region
        %s102 = ssub.s32 %s15, 1
        // Predicated region
        $region13: #{tpu_custom_call.1} parent=11 // pred_check
          %p103 = pneg %p62
        $region14: #{tpu_custom_call.1} parent=11 // pred_check_branch
          %105 = sbr.rel (%p103) target = $region16
        $region15: #{tpu_custom_call.1} parent=11 // pred_region
          %s107 = ssub.s32 128, 128
          %108 = vsyncadd [#allocation6], %s107
          %s110 = sshll.u32 [#allocation5], 4
          %s111 = int_to_ptr.vmem [resolvable:$true] %s110
          %113 = dma.hbm_to_vmem [thread:$0]  %s1, 128, %s111, [#allocation6]
        $region16: #{tpu_custom_call.1} parent=11 // pred_fallthru
          _
      $region12: #{tpu_custom_call.1} parent=5 // pred_fallthru
        _
      %p114 = scmp.lt.s32.totalorder %s15, 2
      // Predicated region
      $region17: #{tpu_custom_call.1} parent=5 // pred_check
        %p115 = pneg %p114
      $region18: #{tpu_custom_call.1} parent=5 // pred_check_branch
        %117 = sbr.rel (%p115) target = $region20
      $region19: #{tpu_custom_call.1} parent=5 // pred_region
        // Predicated region
        $region21: #{tpu_custom_call.1} parent=19 // pred_check
          %p118 = pneg %p35
        $region22: #{tpu_custom_call.1} parent=19 // pred_check_branch
          %120 = sbr.rel (%p118) target = $region24
        $region23: #{tpu_custom_call.1} parent=19 // pred_region
          %s121 = sand.u32 %s25, 1
          %s122 = scalar_lea.sflag [#allocation3], %s121
          %s123 = sand.u32 %s25, 1
          %s124 = smul.addr %s123, 8
          %s125 = scalar_lea.vmem [#allocation2], %s124
          %s127 = ssub.s32 128, 128
          %128 = vsyncadd %s122, %s127
          %s129 = smul.addr %s15, 128
          %s130 = scalar_lea.hbm %s0, %s129
          %s132 = sshll.u32 %s125, 4
          %s133 = int_to_ptr.vmem [resolvable:$true] %s132
          %135 = dma.hbm_to_vmem [thread:$0]  %s130, 128, %s133, %s122
        $region24: #{tpu_custom_call.1} parent=19 // pred_fallthru
          _
      $region20: #{tpu_custom_call.1} parent=5 // pred_fallthru
        _
      %p136 = scmp.le.s32.totalorder 1, %s15
      %p137 = scmp.lt.s32.totalorder %s15, 3
      %p138 = pnand %p136, %p137
      %p139 = pneg %p138
      // Predicated region
      $region25: #{tpu_custom_call.1} parent=5 // pred_check
        _
      $region26: #{tpu_custom_call.1} parent=5 // pred_check_branch
        %141 = sbr.rel (%p138) target = $region28
      $region27: #{tpu_custom_call.1} parent=5 // pred_region
        %s142 = ssub.s32 %s15, 1
        %s143 = sand.u32 %s28, 1
        %s144 = scalar_lea.sflag [#allocation3], %s143
        %s145 = sand.u32 %s28, 1
        %s146 = smul.addr %s145, 8
        %s147 = scalar_lea.vmem [#allocation2], %s146
        // Predicated region
        $region29: #{tpu_custom_call.1} parent=27 // pred_check
          %p148 = pneg %p41
        $region30: #{tpu_custom_call.1} parent=27 // pred_check_branch
          %150 = sbr.rel (%p148) target = $region32
        $region31: #{tpu_custom_call.1} parent=27 // pred_region
          %151 = dma.done %s144, 128
        $region32: #{tpu_custom_call.1} parent=27 // pred_fallthru
          _
        // Predicated region
        $region33: #{tpu_custom_call.1} parent=27 // pred_check
          %p152 = pneg %p62
        $region34: #{tpu_custom_call.1} parent=27 // pred_check_branch
          %154 = sbr.rel (%p152) target = $region36
        $region35: #{tpu_custom_call.1} parent=27 // pred_region
          %155 = dma.done [#allocation6], 128
        $region36: #{tpu_custom_call.1} parent=27 // pred_fallthru
          _
        %s156 = sand.u32 %s28, 1
        %s157 = scalar_lea.sflag [#allocation3], %s156
        %s158 = sand.u32 %s28, 1
        %s159 = smul.addr %s158, 8
        %s160 = scalar_lea.vmem [#allocation2], %s159
        %p161 = pneg %p41
        %p162 = pneg %p38
        %p163 = pneg %p62
        %p164 = pneg %p59
        %p165 = pneg %p88
        %p166 = pneg %p85
        %s167 = sand.u32 %s75, 1
        %s168 = scalar_lea.sflag [#allocation4], %s167
        %s169 = sand.u32 %s75, 1
        %s170 = smul.addr %s169, 8
        %s171 = scalar_lea.vmem [#allocation7], %s170
        %v172 = vld [vmem:[%s147] sm:$0xff]
        %v173 = vld [vmem:[#allocation5] sm:$0xff]
        %v174 = vadd.f32 %v172, %v173
        %175 = vst [vmem:[%s171] sm:$0xff] %v174
        %s176 = sand.u32 %s75, 1
        %s177 = scalar_lea.sflag [#allocation4], %s176
        %s178 = sand.u32 %s75, 1
        %s179 = smul.addr %s178, 8
        %s180 = scalar_lea.vmem [#allocation7], %s179
        // Predicated region
        $region37: #{tpu_custom_call.1} parent=27 // pred_check
          %p181 = pneg %p85
        $region38: #{tpu_custom_call.1} parent=27 // pred_check_branch
          %183 = sbr.rel (%p181) target = $region40
        $region39: #{tpu_custom_call.1} parent=27 // pred_region
          %s185 = ssub.s32 128, 128
          %186 = vsyncadd %s177, %s185
          %s187 = smul.addr %s20, 128
          %s188 = scalar_lea.hbm %s2, %s187
          %s190 = sshll.u32 %s180, 4
          %s191 = int_to_ptr.vmem [resolvable:$true] %s190
          %193 = dma.vmem_to_hbm [thread:$0]  %s191, 128, %s188, %s177
        $region40: #{tpu_custom_call.1} parent=27 // pred_fallthru
          _
      $region28: #{tpu_custom_call.1} parent=5 // pred_fallthru
        _
      %p194 = scmp.le.s32.totalorder 2, %s15
      // Predicated region
      $region41: #{tpu_custom_call.1} parent=5 // pred_check
        %p195 = pneg %p194
      $region42: #{tpu_custom_call.1} parent=5 // pred_check_branch
        %197 = sbr.rel (%p195) target = $region44
      $region43: #{tpu_custom_call.1} parent=5 // pred_region
        %s198 = ssub.s32 %s15, 2
        // Predicated region
        $region45: #{tpu_custom_call.1} parent=43 // pred_check
          %p199 = pneg %p91
        $region46: #{tpu_custom_call.1} parent=43 // pred_check_branch
          %201 = sbr.rel (%p199) target = $region48
        $region47: #{tpu_custom_call.1} parent=43 // pred_region
          %s202 = sand.u32 %s76, 1
          %s203 = scalar_lea.sflag [#allocation4], %s202
          %s204 = sand.u32 %s76, 1
          %s205 = smul.addr %s204, 8
          %s206 = scalar_lea.vmem [#allocation7], %s205
          %207 = dma.done %s203, 128
        $region48: #{tpu_custom_call.1} parent=43 // pred_fallthru
          _
      $region44: #{tpu_custom_call.1} parent=5 // pred_fallthru
        _
    $region6: #{tpu_custom_call.1} parent=1 // loop_footer
      %s19 = sadd.s32 1, %s15
    $region7: #{tpu_custom_call.1} parent=1 // loop_footer_branch
      %14 = sbr.rel target = $region3
    $region8: #{tpu_custom_call.1} parent=1 // loop_exit
      _
    %208 = vsyncpa [#allocation3], 1
    %s209 = scalar_lea.sflag [#allocation3], 1
    %210 = vsyncpa %s209, 1
    %211 = vsyncpa [#allocation6], 1
    %212 = vsyncpa [#allocation4], 1
    %s213 = scalar_lea.sflag [#allocation4], 1
    %214 = vsyncpa %s213, 1

// kernel: tpu_custom_call.1
$region0: #{tpu_custom_call.1}
  #allocation0 [shape = 'u32[]', space=smem, size = 0x4, offset = 0x4, fixed_abs, tag = 'smem constant byte address 0x4 - core index']
  #allocation1 [shape = 'u32[144,128]{1,0:T(1,128)}', space=vmem, size = 0x12000, scoped, tag = 'internal scratch']
  %s0 = inlined_call_operand.hbm [shape: f32[16,32], index: 0, kind: input, shape index: {}]
  %s1 = inlined_call_operand.hbm [shape: bf16[32,96], index: 1, kind: input, shape index: {}]
  %s2 = inlined_call_operand.vmem [shape: f32[1,96], index: 2, kind: input, shape index: {}]
  %s3 = inlined_call_operand.hbm [shape: bf16[16,32], index: 3, kind: output, shape index: {0}]
  %s4 = inlined_call_operand.hbm [shape: bf16[16,32], index: 4, kind: output, shape index: {1}]
  %s5 = inlined_call_operand.hbm [shape: bf16[16,32], index: 5, kind: output, shape index: {2}]
  %6 = xla_tuple %s3, %s4, %s5
  %s7 = sld [smem:[#allocation0]]
  $region69: #{tpu_custom_call.1} parent=0
    _
  %s9 = ssub.s32 1, %s7
  %s10 = scalar_select 0, %s9, %s7
  $region1: #{tpu_custom_call.1} parent=0
    #allocation2 [shape = 'u8[8192]{0}', space=vmem, size = 0x2000, scoped, tag = 'input window, operand 0']
    #allocation3 [shape = 's32[2]{0}', space=sflag, size = 0x8, scoped, tag = 'scoped memory for tpu_custom_call.1']
    #allocation4 [shape = 's32[2]{0}', space=sflag, size = 0x8, scoped, tag = 'scoped memory for tpu_custom_call.1']
    #allocation5 [shape = 'u8[8192]{0}', space=vmem, size = 0x2000, scoped, tag = 'input window, operand 1, single buffered']
    #allocation6 [shape = 's32[1]{0}', space=sflag, size = 0x4, scoped, tag = 'scoped memory for tpu_custom_call.1']
    #allocation7 [shape = 'u8[4096]{0}', space=vmem, size = 0x1000, scoped, tag = 'output window, operand 0']
    #allocation8 [shape = 'u8[4096]{0}', space=vmem, size = 0x1000, scoped, tag = 'output window, operand 1']
    #allocation9 [shape = 's32[2]{0}', space=sflag, size = 0x8, scoped, tag = 'scoped memory for tpu_custom_call.1']
    #allocation10 [shape = 'u8[4096]{0}', space=vmem, size = 0x1000, scoped, tag = 'output window, operand 2']
    %11 = vsyncpa [#allocation3], 0
    %s12 = scalar_lea.sflag [#allocation3], 1
    %13 = vsyncpa %s12, 0
    %14 = vsyncpa [#allocation6], 0
    %15 = vsyncpa [#allocation4], 0
    %s16 = scalar_lea.sflag [#allocation4], 1
    %17 = vsyncpa %s16, 0
    %18 = vsyncpa [#allocation9], 0
    %s19 = scalar_lea.sflag [#allocation9], 1
    %20 = vsyncpa %s19, 0
    loop: start=0, step=1, limit=4
    $region2: #{tpu_custom_call.1} parent=1 // loop_pre_header
      _
    $region3: #{tpu_custom_call.1} parent=1 // loop_header
      %s22 = sphi 0, %s26
      %p23 = scmp.ge.s32.totalorder %s22, 4
      %s32 = sphi 0, %s34
      %s35 = sphi 0, %s32
      %s36 = sphi 0, %s35
      %s52 = sphi 0, %s36
      %s56 = sphi 0, %s56
      %s58 = sphi 0, %s56
      %s59 = sphi 0, %s58
      %s73 = sphi 0, %s59
      %s77 = sphi 0, %s77
      %s79 = sphi 0, %s77
      %s80 = sphi 0, %s79
      %s94 = sphi 0, %s80
      %s100 = sphi 0, %s102
      %s103 = sphi 0, %s100
      %s104 = sphi 0, %s103
      %s120 = sphi 0, %s104
      %s126 = sphi 0, %s128
      %s129 = sphi 0, %s126
      %s130 = sphi 0, %s129
      %s146 = sphi 0, %s130
      %s152 = sphi 0, %s154
      %s155 = sphi 0, %s152
      %s156 = sphi 0, %s155
      %s172 = sphi 0, %s156
    $region4: #{tpu_custom_call.1} parent=1 // loop_header_branch
      %25 = sbr.rel (%p23) target = $region8
    $region5: #{tpu_custom_call.1} parent=1 // loop_body
      %s27 = ssub.s32 %s22, 1
      %s28 = ssub.s32 %s22, 2
      %s29 = sadd.s32 %s22, 1
      %s30 = ssub.s32 %s22, %s29
      %p31 = scmp.eq.s32.totalorder %s30, 0
      %s33 = sadd.s32 %s32, 1
      %s34 = scalar_select %p31, %s32, %s33
      %p37 = pneg %p31
      %p38 = scmp.eq.s32.totalorder %s22, 1
      %p39 = por %p37, %p38
      %p40 = scmp.ne.s32.totalorder %s32, %s35
      %p41 = scmp.eq.s32.totalorder %s22, 0
      %p42 = por %p40, %p41
      %p43 = scmp.ne.s32.totalorder %s32, %s35
      %p44 = scmp.eq.s32.totalorder %s27, 1
      %p45 = por %p43, %p44
      %p46 = scmp.ne.s32.totalorder %s35, %s36
      %p47 = scmp.eq.s32.totalorder %s27, 0
      %p48 = por %p46, %p47
      %p49 = scmp.ne.s32.totalorder %s35, %s36
      %p50 = scmp.eq.s32.totalorder %s28, 1
      %p51 = por %p49, %p50
      %p53 = scmp.ne.s32.totalorder %s36, %s52
      %p54 = scmp.eq.s32.totalorder %s28, 0
      %p55 = por %p53, %p54
      %s57 = sadd.s32 %s56, 1
      %p60 = scmp.eq.s32.totalorder %s22, 1
      %p61 = scmp.ne.s32.totalorder %s56, %s58
      %p62 = scmp.eq.s32.totalorder %s22, 0
      %p63 = por %p61, %p62
      %p64 = scmp.ne.s32.totalorder %s56, %s58
      %p65 = scmp.eq.s32.totalorder %s27, 1
      %p66 = por %p64, %p65
      %p67 = scmp.ne.s32.totalorder %s58, %s59
      %p68 = scmp.eq.s32.totalorder %s27, 0
      %p69 = por %p67, %p68
      %p70 = scmp.ne.s32.totalorder %s58, %s59
      %p71 = scmp.eq.s32.totalorder %s28, 1
      %p72 = por %p70, %p71
      %p74 = scmp.ne.s32.totalorder %s59, %s73
      %p75 = scmp.eq.s32.totalorder %s28, 0
      %p76 = por %p74, %p75
      %s78 = sadd.s32 %s77, 1
      %p81 = scmp.eq.s32.totalorder %s22, 1
      %p82 = scmp.ne.s32.totalorder %s77, %s79
      %p83 = scmp.eq.s32.totalorder %s22, 0
      %p84 = por %p82, %p83
      %p85 = scmp.ne.s32.totalorder %s77, %s79
      %p86 = scmp.eq.s32.totalorder %s27, 1
      %p87 = por %p85, %p86
      %p88 = scmp.ne.s32.totalorder %s79, %s80
      %p89 = scmp.eq.s32.totalorder %s27, 0
      %p90 = por %p88, %p89
      %p91 = scmp.ne.s32.totalorder %s79, %s80
      %p92 = scmp.eq.s32.totalorder %s28, 1
      %p93 = por %p91, %p92
      %p95 = scmp.ne.s32.totalorder %s80, %s94
      %p96 = scmp.eq.s32.totalorder %s28, 0
      %p97 = por %p95, %p96
      %s98 = ssub.s32 %s22, %s29
      %p99 = scmp.eq.s32.totalorder %s98, 0
      %s101 = sadd.s32 %s100, 1
      %s102 = scalar_select %p99, %s100, %s101
      %p105 = pneg %p99
      %p106 = scmp.eq.s32.totalorder %s22, 1
      %p107 = por %p105, %p106
      %p108 = scmp.ne.s32.totalorder %s100, %s103
      %p109 = scmp.eq.s32.totalorder %s22, 0
      %p110 = por %p108, %p109
      %p111 = scmp.ne.s32.totalorder %s100, %s103
      %p112 = scmp.eq.s32.totalorder %s27, 1
      %p113 = por %p111, %p112
      %p114 = scmp.ne.s32.totalorder %s103, %s104
      %p115 = scmp.eq.s32.totalorder %s27, 0
      %p116 = por %p114, %p115
      %p117 = scmp.ne.s32.totalorder %s103, %s104
      %p118 = scmp.eq.s32.totalorder %s28, 1
      %p119 = por %p117, %p118
      %p121 = scmp.ne.s32.totalorder %s104, %s120
      %p122 = scmp.eq.s32.totalorder %s28, 0
      %p123 = por %p121, %p122
      %s124 = ssub.s32 %s22, %s29
      %p125 = scmp.eq.s32.totalorder %s124, 0
      %s127 = sadd.s32 %s126, 1
      %s128 = scalar_select %p125, %s126, %s127
      %p131 = pneg %p125
      %p132 = scmp.eq.s32.totalorder %s22, 1
      %p133 = por %p131, %p132
      %p134 = scmp.ne.s32.totalorder %s126, %s129
      %p135 = scmp.eq.s32.totalorder %s22, 0
      %p136 = por %p134, %p135
      %p137 = scmp.ne.s32.totalorder %s126, %s129
      %p138 = scmp.eq.s32.totalorder %s27, 1
      %p139 = por %p137, %p138
      %p140 = scmp.ne.s32.totalorder %s129, %s130
      %p141 = scmp.eq.s32.totalorder %s27, 0
      %p142 = por %p140, %p141
      %p143 = scmp.ne.s32.totalorder %s129, %s130
      %p144 = scmp.eq.s32.totalorder %s28, 1
      %p145 = por %p143, %p144
      %p147 = scmp.ne.s32.totalorder %s130, %s146
      %p148 = scmp.eq.s32.totalorder %s28, 0
      %p149 = por %p147, %p148
      %s150 = ssub.s32 %s22, %s29
      %p151 = scmp.eq.s32.totalorder %s150, 0
      %s153 = sadd.s32 %s152, 1
      %s154 = scalar_select %p151, %s152, %s153
      %p157 = pneg %p151
      %p158 = scmp.eq.s32.totalorder %s22, 1
      %p159 = por %p157, %p158
      %p160 = scmp.ne.s32.totalorder %s152, %s155
      %p161 = scmp.eq.s32.totalorder %s22, 0
      %p162 = por %p160, %p161
      %p163 = scmp.ne.s32.totalorder %s152, %s155
      %p164 = scmp.eq.s32.totalorder %s27, 1
      %p165 = por %p163, %p164
      %p166 = scmp.ne.s32.totalorder %s155, %s156
      %p167 = scmp.eq.s32.totalorder %s27, 0
      %p168 = por %p166, %p167
      %p169 = scmp.ne.s32.totalorder %s155, %s156
      %p170 = scmp.eq.s32.totalorder %s28, 1
      %p171 = por %p169, %p170
      %p173 = scmp.ne.s32.totalorder %s156, %s172
      %p174 = scmp.eq.s32.totalorder %s28, 0
      %p175 = por %p173, %p174
      %p176 = scmp.le.s32.totalorder 1, %s22
      %p177 = scmp.lt.s32.totalorder %s22, 3
      %p178 = pnand %p176, %p177
      %p179 = pneg %p178
      // Predicated region
      $region9: #{tpu_custom_call.1} parent=5 // pred_check
        _
      $region10: #{tpu_custom_call.1} parent=5 // pred_check_branch
        %181 = sbr.rel (%p178) target = $region12
      $region11: #{tpu_custom_call.1} parent=5 // pred_region
        %s182 = ssub.s32 %s22, 1
        // Predicated region
        $region13: #{tpu_custom_call.1} parent=11 // pred_check
          %p183 = pneg %p69
        $region14: #{tpu_custom_call.1} parent=11 // pred_check_branch
          %185 = sbr.rel (%p183) target = $region16
        $region15: #{tpu_custom_call.1} parent=11 // pred_region
          %s187 = ssub.s32 256, 256
          %188 = vsyncadd [#allocation6], %s187
          %s189 = sshll.u32 [#allocation5], 4
          %s190 = int_to_ptr.vmem [resolvable:$true] %s189
          %195 = dma.hbm_to_vmem [thread:$0]  %s1, 256, %s190, [#allocation6], 64, 64, 4
        $region16: #{tpu_custom_call.1} parent=11 // pred_fallthru
          _
        // Predicated region
        $region17: #{tpu_custom_call.1} parent=11 // pred_check
          %p196 = pneg %p90
        $region18: #{tpu_custom_call.1} parent=11 // pred_check_branch
          %198 = sbr.rel (%p196) target = $region20
        $region19: #{tpu_custom_call.1} parent=11 // pred_region
          _
        $region20: #{tpu_custom_call.1} parent=11 // pred_fallthru
          _
      $region12: #{tpu_custom_call.1} parent=5 // pred_fallthru
        _
      %p199 = scmp.lt.s32.totalorder %s22, 2
      // Predicated region
      $region21: #{tpu_custom_call.1} parent=5 // pred_check
        %p200 = pneg %p199
      $region22: #{tpu_custom_call.1} parent=5 // pred_check_branch
        %202 = sbr.rel (%p200) target = $region24
      $region23: #{tpu_custom_call.1} parent=5 // pred_region
        // Predicated region
        $region25: #{tpu_custom_call.1} parent=23 // pred_check
          %p203 = pneg %p42
        $region26: #{tpu_custom_call.1} parent=23 // pred_check_branch
          %205 = sbr.rel (%p203) target = $region28
        $region27: #{tpu_custom_call.1} parent=23 // pred_region
          %s206 = sand.u32 %s32, 1
          %s207 = scalar_lea.sflag [#allocation3], %s206
          %s208 = sand.u32 %s32, 1
          %s209 = smul.addr %s208, 8
          %s210 = scalar_lea.vmem [#allocation2], %s209
          %s212 = ssub.s32 128, 128
          %213 = vsyncadd %s207, %s212
          %s214 = smul.addr %s22, 128
          %s215 = scalar_lea.hbm %s0, %s214
          %s217 = sshll.u32 %s210, 4
          %s218 = int_to_ptr.vmem [resolvable:$true] %s217
          %220 = dma.hbm_to_vmem [thread:$0]  %s215, 128, %s218, %s207
        $region28: #{tpu_custom_call.1} parent=23 // pred_fallthru
          _
      $region24: #{tpu_custom_call.1} parent=5 // pred_fallthru
        _
      %p221 = scmp.le.s32.totalorder 1, %s22
      %p222 = scmp.lt.s32.totalorder %s22, 3
      %p223 = pnand %p221, %p222
      %p224 = pneg %p223
      // Predicated region
      $region29: #{tpu_custom_call.1} parent=5 // pred_check
        _
      $region30: #{tpu_custom_call.1} parent=5 // pred_check_branch
        %226 = sbr.rel (%p223) target = $region32
      $region31: #{tpu_custom_call.1} parent=5 // pred_region
        %s227 = ssub.s32 %s22, 1
        %s228 = sand.u32 %s35, 1
        %s229 = scalar_lea.sflag [#allocation3], %s228
        %s230 = sand.u32 %s35, 1
        %s231 = smul.addr %s230, 8
        %s232 = scalar_lea.vmem [#allocation2], %s231
        // Predicated region
        $region33: #{tpu_custom_call.1} parent=31 // pred_check
          %p233 = pneg %p48
        $region34: #{tpu_custom_call.1} parent=31 // pred_check_branch
          %235 = sbr.rel (%p233) target = $region36
        $region35: #{tpu_custom_call.1} parent=31 // pred_region
          %236 = dma.done %s229, 128
        $region36: #{tpu_custom_call.1} parent=31 // pred_fallthru
          _
        // Predicated region
        $region37: #{tpu_custom_call.1} parent=31 // pred_check
          %p237 = pneg %p69
        $region38: #{tpu_custom_call.1} parent=31 // pred_check_branch
          %239 = sbr.rel (%p237) target = $region40
        $region39: #{tpu_custom_call.1} parent=31 // pred_region
          %240 = dma.done [#allocation6], 256
        $region40: #{tpu_custom_call.1} parent=31 // pred_fallthru
          _
        %s241 = sand.u32 %s35, 1
        %s242 = scalar_lea.sflag [#allocation3], %s241
        %s243 = sand.u32 %s35, 1
        %s244 = smul.addr %s243, 8
        %s245 = scalar_lea.vmem [#allocation2], %s244
        %p246 = pneg %p48
        %p247 = pneg %p45
        %p248 = pneg %p69
        %p249 = pneg %p66
        %p250 = pneg %p90
        %p251 = pneg %p87
        %p252 = pneg %p116
        %p253 = pneg %p113
        %s254 = sand.u32 %s103, 1
        %s255 = scalar_lea.sflag [#allocation4], %s254
        %s256 = sand.u32 %s103, 1
        %s257 = smul.addr %s256, 4
        %s258 = scalar_lea.vmem [#allocation7], %s257
        %p259 = pneg %p142
        %p260 = pneg %p139
        %s261 = sand.u32 %s27, 1
        %s262 = scalar_lea.sflag [#allocation9], %s261
        %s263 = sand.u32 %s129, 1
        %s264 = smul.addr %s263, 4
        %s265 = scalar_lea.vmem [#allocation8], %s264
        %p266 = pneg %p168
        %p267 = pneg %p165
        %s268 = sand.u32 %s27, 1
        %s269 = scalar_lea.sflag [#allocation9], %s268
        %s270 = sand.u32 %s155, 1
        %s271 = smul.addr %s270, 4
        %s272 = scalar_lea.vmem [#allocation10], %s271
        %v274 = vld [vmem:[%s232] sm:$0xff]
        %v275 = vpack.c.bf16 %v274, %v274
        %v276 = vld [vmem:[#allocation5] sm:$0xf]
        %v277 = vld [vmem:[#allocation5 + $0x4] sm:$0xf]
        %v278 = vld [vmem:[#allocation5 + $0x8] sm:$0xf]
        %v279 = vld [vmem:[#allocation5 + $0xc] sm:$0xf]
        %v280 = vld [vmem:[%s2] sm:$0x1]
        %v282 = vlaneseq
        %v283 = vshrl.u32 %v282, 7
        %v284 = vsub.s32 0, %v283
        %v285 = vrot.slane %v280, %v284
        %v291 = vunpack.c.l.b16 %v276
        %v292 = vunpack.c.l.b16 %v277
        %v293 = vunpack.c.l.b16 %v278
        %v294 = vunpack.c.l.b16 %v279
        %v295 = vpack.c.b16 %v292, %v291
        %v296 = vpack.c.b16 %v294, %v293
        %vm299 = vcmask 261120
        %v301 = vsel %vm299, %v275, 0
        %303 = vmatprep.subr.bf16.mxu0 0
        %304 = vmatpush1.bf16.msra.mxu0 %v295
        %305 = vmatprep.subr.bf16.mxu0 0
        %306 = vmatpush1.bf16.msra.mxu0 %v296
        %307 = vmatprep.subr.bf16.mxu0 0
        %308 = vmatpush1.bf16.msra.mxu0 0
        %309 = vmatprep.subr.bf16.mxu0 0
        %310 = vmatpush1.bf16.msra.mxu0 0
        %311 = vmatprep.subr.bf16.mxu0 0
        %312 = vmatpush1.bf16.msra.mxu0 0
        %313 = vmatprep.subr.bf16.mxu0 0
        %314 = vmatpush1.bf16.msra.mxu0 0
        %315 = vmatprep.subr.bf16.mxu0 0
        %316 = vmatpush1.bf16.msra.mxu0 0
        %317 = vmatprep.subr.bf16.mxu0 0
        %318 = vmatpush1.bf16.msra.mxu0 0
        %319 = vmatprep.subr.bf16.mxu0 0
        %320 = vmatpush1.bf16.msra.mxu0 0
        %321 = vmatprep.subr.bf16.mxu0 0
        %322 = vmatpush1.bf16.msra.mxu0 0
        %323 = vmatprep.subr.bf16.mxu0 0
        %324 = vmatpush1.bf16.msra.mxu0 0
        %325 = vmatprep.subr.bf16.mxu0 0
        %326 = vmatpush1.bf16.msra.mxu0 0
        %327 = vmatprep.subr.bf16.mxu0 0
        %328 = vmatpush1.bf16.msra.mxu0 0
        %329 = vmatprep.subr.bf16.mxu0 0
        %330 = vmatpush1.bf16.msra.mxu0 0
        %331 = vmatprep.subr.bf16.mxu0 0
        %332 = vmatpush1.bf16.msra.mxu0 0
        %333 = vmatprep.subr.bf16.mxu0 0
        %334 = vmatpush1.bf16.msra.mxu0 0
        %335 = vmatprep.mubr.bf16.mxu0 0
        %336 = vmatmul.mubr.bf16.gmra.mrb[0].mxu0 %v301
        %v337 = vpop.f32.mrb[0].mxu0
        %v338 = vadd.f32 %v285, %v337
        %v339 = vpop.f32.mrb[0].mxu0
        %v340 = vpop.f32.mrb[0].mxu0
        %v341 = vpop.f32.mrb[0].mxu0
        %342 = vdwg.mxu0
        %v343 = vmul.f32 %v338, 0.35355338
        %v344 = vpack.c.bf16 %v343, %v343
        %vm345 = vcmask 257024
        %346 = vst.msk [vmem:[%s258] sm:$0xf] %vm345, %v344
        %v347 = vpack.c.bf16 %v338, %v338
        %v349 = vunpack.c.l.b16 %v347
        %v350 = vpack.c.b16 %v349, %v349
        %351 = vrot.lane.b32.xlu0 %v350, 96
        %v352 = vpop.permute.xlu0 %351
        %354 = vst.msk [vmem:[%s265] sm:$0xf] %vm345, %v352
        %355 = vrot.lane.b32.xlu0 %v350, 64
        %v356 = vpop.permute.xlu0 %355
        %358 = vst.msk [vmem:[%s272] sm:$0xf] %vm345, %v356
        %s359 = sand.u32 %s103, 1
        %s360 = scalar_lea.sflag [#allocation4], %s359
        %s361 = sand.u32 %s103, 1
        %s362 = smul.addr %s361, 4
        %s363 = scalar_lea.vmem [#allocation7], %s362
        %s364 = sand.u32 %s27, 1
        %s365 = scalar_lea.sflag [#allocation9], %s364
        %s366 = sand.u32 %s129, 1
        %s367 = smul.addr %s366, 4
        %s368 = scalar_lea.vmem [#allocation8], %s367
        %s369 = sand.u32 %s27, 1
        %s370 = scalar_lea.sflag [#allocation9], %s369
        %s371 = sand.u32 %s155, 1
        %s372 = smul.addr %s371, 4
        %s373 = scalar_lea.vmem [#allocation10], %s372
        // Predicated region
        $region41: #{tpu_custom_call.1} parent=31 // pred_check
          %p374 = pneg %p113
        $region42: #{tpu_custom_call.1} parent=31 // pred_check_branch
          %376 = sbr.rel (%p374) target = $region44
        $region43: #{tpu_custom_call.1} parent=31 // pred_region
          %s378 = ssub.s32 64, 64
          %379 = vsyncadd %s360, %s378
          %s380 = smul.addr %s27, 64
          %s381 = scalar_lea.hbm %s3, %s380
          %s383 = sshll.u32 %s363, 4
          %s384 = int_to_ptr.vmem [resolvable:$true] %s383
          %386 = dma.vmem_to_hbm [thread:$0]  %s384, 64, %s381, %s360
        $region44: #{tpu_custom_call.1} parent=31 // pred_fallthru
          _
        // Predicated region
        $region45: #{tpu_custom_call.1} parent=31 // pred_check
          %p387 = pneg %p139
        $region46: #{tpu_custom_call.1} parent=31 // pred_check_branch
          %389 = sbr.rel (%p387) target = $region48
        $region47: #{tpu_custom_call.1} parent=31 // pred_region
          %s391 = ssub.s32 64, 64
          %392 = vsyncadd %s365, %s391
          %s393 = smul.addr %s27, 64
          %s394 = scalar_lea.hbm %s4, %s393
          %s396 = sshll.u32 %s368, 4
          %s397 = int_to_ptr.vmem [resolvable:$true] %s396
          %399 = dma.vmem_to_hbm [thread:$0]  %s397, 64, %s394, %s365
        $region48: #{tpu_custom_call.1} parent=31 // pred_fallthru
          _
        // Predicated region
        $region49: #{tpu_custom_call.1} parent=31 // pred_check
          %p400 = pneg %p165
        $region50: #{tpu_custom_call.1} parent=31 // pred_check_branch
          %402 = sbr.rel (%p400) target = $region52
        $region51: #{tpu_custom_call.1} parent=31 // pred_region
          %s404 = ssub.s32 64, 64
          %405 = vsyncadd %s370, %s404
          %s406 = smul.addr %s27, 64
          %s407 = scalar_lea.hbm %s5, %s406
          %s409 = sshll.u32 %s373, 4
          %s410 = int_to_ptr.vmem [resolvable:$true] %s409
          %412 = dma.vmem_to_hbm [thread:$0]  %s410, 64, %s407, %s370
        $region52: #{tpu_custom_call.1} parent=31 // pred_fallthru
          _
      $region32: #{tpu_custom_call.1} parent=5 // pred_fallthru
        _
      %p413 = scmp.le.s32.totalorder 2, %s22
      // Predicated region
      $region53: #{tpu_custom_call.1} parent=5 // pred_check
        %p414 = pneg %p413
      $region54: #{tpu_custom_call.1} parent=5 // pred_check_branch
        %416 = sbr.rel (%p414) target = $region56
      $region55: #{tpu_custom_call.1} parent=5 // pred_region
        %s417 = ssub.s32 %s22, 2
        // Predicated region
        $region57: #{tpu_custom_call.1} parent=55 // pred_check
          %p418 = pneg %p119
        $region58: #{tpu_custom_call.1} parent=55 // pred_check_branch
          %420 = sbr.rel (%p418) target = $region60
        $region59: #{tpu_custom_call.1} parent=55 // pred_region
          %s421 = sand.u32 %s104, 1
          %s422 = scalar_lea.sflag [#allocation4], %s421
          %s423 = sand.u32 %s104, 1
          %s424 = smul.addr %s423, 4
          %s425 = scalar_lea.vmem [#allocation7], %s424
          %426 = dma.done %s422, 64
        $region60: #{tpu_custom_call.1} parent=55 // pred_fallthru
          _
        // Predicated region
        $region61: #{tpu_custom_call.1} parent=55 // pred_check
          %p427 = pneg %p145
        $region62: #{tpu_custom_call.1} parent=55 // pred_check_branch
          %429 = sbr.rel (%p427) target = $region64
        $region63: #{tpu_custom_call.1} parent=55 // pred_region
          %s430 = sand.u32 %s28, 1
          %s431 = scalar_lea.sflag [#allocation9], %s430
          %s432 = sand.u32 %s130, 1
          %s433 = smul.addr %s432, 4
          %s434 = scalar_lea.vmem [#allocation8], %s433
          %435 = dma.done %s431, 64
        $region64: #{tpu_custom_call.1} parent=55 // pred_fallthru
          _
        // Predicated region
        $region65: #{tpu_custom_call.1} parent=55 // pred_check
          %p436 = pneg %p171
        $region66: #{tpu_custom_call.1} parent=55 // pred_check_branch
          %438 = sbr.rel (%p436) target = $region68
        $region67: #{tpu_custom_call.1} parent=55 // pred_region
          %s439 = sand.u32 %s28, 1
          %s440 = scalar_lea.sflag [#allocation9], %s439
          %s441 = sand.u32 %s156, 1
          %s442 = smul.addr %s441, 4
          %s443 = scalar_lea.vmem [#allocation10], %s442
          %444 = dma.done %s440, 64
        $region68: #{tpu_custom_call.1} parent=55 // pred_fallthru
          _
      $region56: #{tpu_custom_call.1} parent=5 // pred_fallthru
        _
    $region6: #{tpu_custom_call.1} parent=1 // loop_footer
      %s26 = sadd.s32 1, %s22
    $region7: #{tpu_custom_call.1} parent=1 // loop_footer_branch
      %21 = sbr.rel target = $region3
    $region8: #{tpu_custom_call.1} parent=1 // loop_exit
      _
    %445 = vsyncpa [#allocation3], 1
    %s446 = scalar_lea.sflag [#allocation3], 1
    %447 = vsyncpa %s446, 1
    %448 = vsyncpa [#allocation6], 1
    %449 = vsyncpa [#allocation4], 1
    %s450 = scalar_lea.sflag [#allocation4], 1
    %451 = vsyncpa %s450, 1
    %452 = vsyncpa [#allocation9], 1
    %s453 = scalar_lea.sflag [#allocation9], 1
    %454 = vsyncpa %s453, 1

</llo_original>
